<compile_context>
chip_gen: v6e
topology: v6e:2x2x1
jax: 0.10.0
libtpu: 0.0.40
codegen_flags: <defaults>
</compile_context>

<pallas_src>
import jax
import jax.numpy as jnp
from jax.experimental import pallas as pl
from jax.experimental.pallas import tpu as pltpu

HIDDEN = 128
LANE = 128
SUBLANE = 8


def _round_up(a, m):
    return ((a + m - 1) // m) * m


def lpv_nn_kernel(x_ref,
                  w1_ref, b1_ref,
                  w2_ref, b2_ref,
                  w3_ref, b3_ref,
                  wo_ref, bo_ref,
                  out_ref):
    """Fused 4-layer MLP: three Linear+tanh (hidden=128) and a Linear output.

    All four matmuls run on the MXU with f32 accumulation.  The bias-add/tanh
    chain runs in b1_ref.dtype (bf16 on v6e/v7x which have bf16 VPU/EUP, f32
    otherwise); the MXU operand dtype is w2_ref.dtype (bf16 default, or f32).
    """
    mm = w2_ref.dtype          # MXU operand dtype
    ew = b1_ref.dtype          # elementwise (bias + tanh) dtype
    out_dim = out_ref.shape[-1]

    x = x_ref[...].astype(mm)                                    # (tb, K_pad)

    # Layer 1: tiny K (padded to 16) but keeps the otherwise-idle MXU busy
    # instead of doing cross-lane broadcasts on the VPU.
    h = jnp.dot(x, w1_ref[...], preferred_element_type=jnp.float32)
    h = jnp.tanh(h.astype(ew) + b1_ref[...]).astype(mm)

    # Layers 2 & 3: clean (tb,128)x(128,128) MXU tiles, f32 accumulate.
    h = jnp.dot(h, w2_ref[...], preferred_element_type=jnp.float32)
    h = jnp.tanh(h.astype(ew) + b2_ref[...]).astype(mm)
    h = jnp.dot(h, w3_ref[...], preferred_element_type=jnp.float32)
    h = jnp.tanh(h.astype(ew) + b3_ref[...]).astype(mm)

    # Output layer: lane-padded (128-wide) weights for a clean MXU tile, but
    # only the true output_dim columns are stored (masked vst into a
    # contiguous tb*out_dim*4-byte HBM region -- no write amplification).
    y = jnp.dot(h, wo_ref[...], preferred_element_type=jnp.float32) + bo_ref[...]
    out_ref[...] = y[:, :out_dim].astype(out_ref.dtype)


def _device_kind():
    try:
        return jax.devices()[0].device_kind.lower()
    except Exception:
        return ""


def _num_tensorcores(kind):
    # v7x has 2 TensorCores per chip; v5e / v6e have 1.
    return 2 if "v7" in kind else 1


def _has_bf16_vpu(kind):
    # v6e / v7x have a bf16 VPU/EUP; v5e (and older) do not.
    return ("v6" in kind) or ("v7" in kind)


def _choose_tile_b(batch, requested, n_cores):
    """Sublane-aligned batch tile.  Only force >=2 grid steps when the chip
    actually has 2 TensorCores; otherwise use the largest tile <= batch."""
    b_aligned = _round_up(max(batch, 1), SUBLANE)
    req = _round_up(max(requested, SUBLANE), SUBLANE)
    tb = min(req, b_aligned)
    if n_cores > 1 and b_aligned >= 2 * SUBLANE:
        half = _round_up(pl.cdiv(b_aligned, 2), SUBLANE)
        tb = min(tb, half)
    return tb


def lpv_nn_forward(x, params, *, tile_b=1024, matmul_dtype=jnp.bfloat16):
    """LPV_NN forward.  x: (B, input_dim) float32.

    params: [(w1,b1),(w2,b2),(w3,b3),(wo,bo)] with w stored as
    (in_features, out_features) and b stored as (1, out_features).
    NOTE: PyTorch nn.Linear stores weight (out,in) and bias (out,); transpose
    the weight and reshape the bias to (1, out) when importing.
    """
    (w1, b1), (w2, b2), (w3, b3), (wo, bo) = params
    B, input_dim = x.shape
    output_dim = wo.shape[1]

    kind = _device_kind()
    n_tc = _num_tensorcores(kind)
    # bf16 elementwise only where the VPU/EUP supports it AND the matmul path
    # is already bf16 (keeps the f32 validation path bit-tight).
    if _has_bf16_vpu(kind) and jnp.dtype(matmul_dtype) != jnp.dtype(jnp.float32):
        ew_dtype = matmul_dtype
    else:
        ew_dtype = jnp.float32

    # ---- batch tiling / padding --------------------------------------------
    tb = _choose_tile_b(B, tile_b, n_tc)
    B_pad = _round_up(_round_up(B, SUBLANE), tb)
    if n_tc > 1 and B_pad // tb > 1:
        # Even number of grid steps so both TensorCores stay loaded.
        B_pad = _round_up(B_pad, n_tc * tb)
    grid = (B_pad // tb,)

    # ---- pad the tiny input K to a packing-friendly 16 lanes ----------------
    k_pad = _round_up(max(input_dim, 16), 16)
    x_p = x
    if (B_pad != B) or (k_pad != input_dim):
        x_p = jnp.pad(x, ((0, B_pad - B), (0, k_pad - input_dim)))
    w1_p = jnp.pad(w1, ((0, k_pad - input_dim), (0, 0)))

    # ---- lane-pad output-layer weights to a full MXU tile (store stays true
    #      width, so this never touches HBM output traffic) -------------------
    n_pad = _round_up(output_dim, LANE)
    wo_p = jnp.pad(wo, ((0, 0), (0, n_pad - output_dim)))
    bo_p = jnp.pad(bo, ((0, 0), (0, n_pad - output_dim)))

    # ---- dtype casts ---------------------------------------------------------
    w1_c = w1_p.astype(matmul_dtype)
    w2_c = w2.astype(matmul_dtype)
    w3_c = w3.astype(matmul_dtype)
    wo_c = wo_p.astype(matmul_dtype)
    b1_c = b1.astype(ew_dtype)
    b2_c = b2.astype(ew_dtype)
    b3_c = b3.astype(ew_dtype)
    bo_c = bo_p.astype(jnp.float32)

    x_spec = pl.BlockSpec((tb, k_pad), lambda i: (i, 0))
    out_spec = pl.BlockSpec((tb, output_dim), lambda i: (i, 0))

    def const2d(a):
        # Whole array, constant index map -> fetched once, reused every step.
        # TODO(synk): pl.Buffered(1) / scratch preload would drop the default
        # 2x buffering (~100 KiB); skipped to keep the lowering path simple.
        return pl.BlockSpec(a.shape, lambda i: (0, 0))

    in_specs = [
        x_spec,
        const2d(w1_c), const2d(b1_c),
        const2d(w2_c), const2d(b2_c),
        const2d(w3_c), const2d(b3_c),
        const2d(wo_c), const2d(bo_c),
    ]

    # ---- advisory cost estimate (matches the real, small HBM footprint) -----
    mm_bytes = jnp.dtype(matmul_dtype).itemsize
    ew_bytes = jnp.dtype(ew_dtype).itemsize
    flops = 2 * B_pad * (k_pad * HIDDEN + 2 * HIDDEN * HIDDEN + HIDDEN * n_pad)
    transcendentals = 3 * B_pad * HIDDEN
    bytes_accessed = (
        B_pad * k_pad * 4 + B_pad * output_dim * 4
        + (w1_c.size + w2_c.size + w3_c.size + wo_c.size) * mm_bytes
        + (b1_c.size + b2_c.size + b3_c.size) * ew_bytes
        + bo_c.size * 4)
    cost = pl.CostEstimate(flops=flops,
                           transcendentals=transcendentals,
                           bytes_accessed=bytes_accessed)

    out = pl.pallas_call(
        lpv_nn_kernel,
        out_shape=jax.ShapeDtypeStruct((B_pad, output_dim), x.dtype),
        grid_spec=pltpu.PrefetchScalarGridSpec(
            num_scalar_prefetch=0,
            grid=grid,
            in_specs=in_specs,
            out_specs=out_spec,
        ),
        compiler_params=pltpu.CompilerParams(
            dimension_semantics=("parallel",)),
        cost_estimate=cost,
    )(x_p, w1_c, b1_c, w2_c, b2_c, w3_c, b3_c, wo_c, bo_c)

    return out if B_pad == B else out[:B]


def init_params(key, input_dim, output_dim):
    """Deterministic init mimicking nn.Linear's U(-1/sqrt(fan_in), 1/sqrt(fan_in))."""
    dims = [(input_dim, HIDDEN), (HIDDEN, HIDDEN), (HIDDEN, HIDDEN),
            (HIDDEN, output_dim)]
    params = []
    for (fan_in, fan_out) in dims:
        key, kw, kb = jax.random.split(key, 3)
        bound = 1.0 / jnp.sqrt(jnp.float32(fan_in))
        w = jax.random.uniform(kw, (fan_in, fan_out), jnp.float32, -bound, bound)
        b = jax.random.uniform(kb, (1, fan_out), jnp.float32, -bound, bound)
        params.append((w, b))
    return params


def lpv_nn_reference(x, params):
    (w1, b1), (w2, b2), (w3, b3), (wo, bo) = params
    h = jnp.tanh(x @ w1 + b1)
    h = jnp.tanh(h @ w2 + b2)
    h = jnp.tanh(h @ w3 + b3)
    return h @ wo + bo


if __name__ == "__main__":
    key = jax.random.PRNGKey(0)
    input_dim, output_dim = 4, 3
    batch = 128

    kx, kp = jax.random.split(key)
    x = jax.random.normal(kx, (batch, input_dim), jnp.float32)
    params = init_params(kp, input_dim, output_dim)
    ref = lpv_nn_reference(x, params)

    # Full-f32 path (f32 matmul + f32 elementwise): tight tolerance.
    out_f32 = jax.block_until_ready(
        lpv_nn_forward(x, params, matmul_dtype=jnp.float32))
    assert out_f32.shape == (batch, output_dim)
    assert jnp.allclose(out_f32, ref, atol=1e-4, rtol=1e-4), "f32 mismatch"

    # Default bf16 MXU path (bf16 elementwise on v6e/v7x): looser tolerance.
    out_bf16 = jax.block_until_ready(lpv_nn_forward(x, params))
    assert out_bf16.shape == (batch, output_dim)
    assert jnp.allclose(out_bf16, ref, atol=5e-2, rtol=5e-2), "bf16 mismatch"

    # Odd batch exercises the batch-padding path (no divisibility assert).
    x_odd = jax.random.normal(kx, (50, input_dim), jnp.float32)
    out_odd = jax.block_until_ready(
        lpv_nn_forward(x_odd, params, matmul_dtype=jnp.float32))
    assert out_odd.shape == (50, output_dim)
    assert jnp.allclose(out_odd, lpv_nn_reference(x_odd, params),
                        atol=1e-4, rtol=1e-4), "odd-batch mismatch"

    print("KERNEL_OK")
</pallas_src>

<mosaic_0001>
module attributes {stable_mosaic.version = 11 : i64} {
  func.func @lpv_nn_kernel(%arg0: i32, %arg1: memref<128x16xf32, #tpu.memory_space<vmem>>, %arg2: memref<16x128xf32, #tpu.memory_space<vmem>>, %arg3: memref<1x128xf32, #tpu.memory_space<vmem>>, %arg4: memref<128x128xf32, #tpu.memory_space<vmem>>, %arg5: memref<1x128xf32, #tpu.memory_space<vmem>>, %arg6: memref<128x128xf32, #tpu.memory_space<vmem>>, %arg7: memref<1x128xf32, #tpu.memory_space<vmem>>, %arg8: memref<128x128xf32, #tpu.memory_space<vmem>>, %arg9: memref<1x128xf32, #tpu.memory_space<vmem>>, %arg10: memref<128x3xf32, #tpu.memory_space<vmem>>) attributes {dimension_semantics = [#tpu.dimension_semantics<parallel>], iteration_bounds = array<i64: 1>, scalar_prefetch = 0 : i64, scratch_operands = 0 : i64, tpu.core_type = #tpu.core_type<tc>, window_params = [{transform_indices = @transform_0, window_bounds = array<i64: 128, 16>}, {pipeline_mode = #tpu.pipeline_mode<synchronous>, transform_indices = @transform_1, window_bounds = array<i64: 16, 128>}, {pipeline_mode = #tpu.pipeline_mode<synchronous>, transform_indices = @transform_2, window_bounds = array<i64: 1, 128>}, {pipeline_mode = #tpu.pipeline_mode<synchronous>, transform_indices = @transform_3, window_bounds = array<i64: 128, 128>}, {pipeline_mode = #tpu.pipeline_mode<synchronous>, transform_indices = @transform_4, window_bounds = array<i64: 1, 128>}, {pipeline_mode = #tpu.pipeline_mode<synchronous>, transform_indices = @transform_5, window_bounds = array<i64: 128, 128>}, {pipeline_mode = #tpu.pipeline_mode<synchronous>, transform_indices = @transform_6, window_bounds = array<i64: 1, 128>}, {pipeline_mode = #tpu.pipeline_mode<synchronous>, transform_indices = @transform_7, window_bounds = array<i64: 128, 128>}, {pipeline_mode = #tpu.pipeline_mode<synchronous>, transform_indices = @transform_8, window_bounds = array<i64: 1, 128>}, {transform_indices = @transform_9, window_bounds = array<i64: 128, 3>}]} {
    %c0 = arith.constant 0 : index
    %c0_0 = arith.constant 0 : index
    %0 = vector.load %arg1[%c0, %c0_0] : memref<128x16xf32, #tpu.memory_space<vmem>>, vector<128x16xf32>
    %c0_1 = arith.constant 0 : index
    %c0_2 = arith.constant 0 : index
    %1 = vector.load %arg2[%c0_1, %c0_2] : memref<16x128xf32, #tpu.memory_space<vmem>>, vector<16x128xf32>
    %cst = arith.constant dense<0.000000e+00> : vector<128x128xf32>
    %2 = tpu.matmul %0, %1, %cst {dimension_numbers = #tpu.dot_dimension_numbers<[1], [0], [0], [1], [0, 0, 1, 1], [], []>} : vector<128x16xf32>, vector<16x128xf32>, vector<128x128xf32> -> vector<128x128xf32>
    %c0_3 = arith.constant 0 : index
    %c0_4 = arith.constant 0 : index
    %3 = vector.load %arg3[%c0_3, %c0_4] : memref<1x128xf32, #tpu.memory_space<vmem>>, vector<1x128xf32>
    %4 = vector.broadcast %3 : vector<1x128xf32> to vector<128x128xf32>
    %5 = arith.addf %2, %4 : vector<128x128xf32>
    %6 = math.tanh %5 : vector<128x128xf32>
    %c0_5 = arith.constant 0 : index
    %c0_6 = arith.constant 0 : index
    %7 = vector.load %arg4[%c0_5, %c0_6] : memref<128x128xf32, #tpu.memory_space<vmem>>, vector<128x128xf32>
    %cst_7 = arith.constant dense<0.000000e+00> : vector<128x128xf32>
    %8 = tpu.matmul %6, %7, %cst_7 {dimension_numbers = #tpu.dot_dimension_numbers<[1], [0], [0], [1], [0, 0, 1, 1], [], []>} : vector<128x128xf32>, vector<128x128xf32>, vector<128x128xf32> -> vector<128x128xf32>
    %c0_8 = arith.constant 0 : index
    %c0_9 = arith.constant 0 : index
    %9 = vector.load %arg5[%c0_8, %c0_9] : memref<1x128xf32, #tpu.memory_space<vmem>>, vector<1x128xf32>
    %10 = vector.broadcast %9 : vector<1x128xf32> to vector<128x128xf32>
    %11 = arith.addf %8, %10 : vector<128x128xf32>
    %12 = math.tanh %11 : vector<128x128xf32>
    %c0_10 = arith.constant 0 : index
    %c0_11 = arith.constant 0 : index
    %13 = vector.load %arg6[%c0_10, %c0_11] : memref<128x128xf32, #tpu.memory_space<vmem>>, vector<128x128xf32>
    %cst_12 = arith.constant dense<0.000000e+00> : vector<128x128xf32>
    %14 = tpu.matmul %12, %13, %cst_12 {dimension_numbers = #tpu.dot_dimension_numbers<[1], [0], [0], [1], [0, 0, 1, 1], [], []>} : vector<128x128xf32>, vector<128x128xf32>, vector<128x128xf32> -> vector<128x128xf32>
    %c0_13 = arith.constant 0 : index
    %c0_14 = arith.constant 0 : index
    %15 = vector.load %arg7[%c0_13, %c0_14] : memref<1x128xf32, #tpu.memory_space<vmem>>, vector<1x128xf32>
    %16 = vector.broadcast %15 : vector<1x128xf32> to vector<128x128xf32>
    %17 = arith.addf %14, %16 : vector<128x128xf32>
    %18 = math.tanh %17 : vector<128x128xf32>
    %c0_15 = arith.constant 0 : index
    %c0_16 = arith.constant 0 : index
    %19 = vector.load %arg8[%c0_15, %c0_16] : memref<128x128xf32, #tpu.memory_space<vmem>>, vector<128x128xf32>
    %cst_17 = arith.constant dense<0.000000e+00> : vector<128x128xf32>
    %20 = tpu.matmul %18, %19, %cst_17 {dimension_numbers = #tpu.dot_dimension_numbers<[1], [0], [0], [1], [0, 0, 1, 1], [], []>} : vector<128x128xf32>, vector<128x128xf32>, vector<128x128xf32> -> vector<128x128xf32>
    %c0_18 = arith.constant 0 : index
    %c0_19 = arith.constant 0 : index
    %21 = vector.load %arg9[%c0_18, %c0_19] : memref<1x128xf32, #tpu.memory_space<vmem>>, vector<1x128xf32>
    %22 = vector.broadcast %21 : vector<1x128xf32> to vector<128x128xf32>
    %23 = arith.addf %20, %22 : vector<128x128xf32>
    %24 = vector.extract_strided_slice %23 {offsets = [0, 0], sizes = [128, 3], strides = [1, 1]} : vector<128x128xf32> to vector<128x3xf32>
    %c0_20 = arith.constant 0 : index
    %c0_21 = arith.constant 0 : index
    %25 = vector.load %arg10[%c0_20, %c0_21] : memref<128x3xf32, #tpu.memory_space<vmem>>, vector<128x3xf32>
    tpu.vector_store %arg10[%c0_20, %c0_21], %24 {strides = array<i32>} : memref<128x3xf32, #tpu.memory_space<vmem>>, vector<128x3xf32>,
    return
  }
  func.func @transform_0(%arg0: i32) -> (i32, i32) {
    %c0_i32 = arith.constant 0 : i32
    %c0_i32_0 = arith.constant 0 : i32
    return %arg0, %c0_i32 : i32, i32
  }
  func.func @transform_1(%arg0: i32) -> (i32, i32) {
    %c0_i32 = arith.constant 0 : i32
    %c0_i32_0 = arith.constant 0 : i32
    %c0_i32_1 = arith.constant 0 : i32
    return %c0_i32, %c0_i32_0 : i32, i32
  }
  func.func @transform_2(%arg0: i32) -> (i32, i32) {
    %c0_i32 = arith.constant 0 : i32
    %c0_i32_0 = arith.constant 0 : i32
    %c0_i32_1 = arith.constant 0 : i32
    return %c0_i32, %c0_i32_0 : i32, i32
  }
  func.func @transform_3(%arg0: i32) -> (i32, i32) {
    %c0_i32 = arith.constant 0 : i32
    %c0_i32_0 = arith.constant 0 : i32
    %c0_i32_1 = arith.constant 0 : i32
    return %c0_i32, %c0_i32_0 : i32, i32
  }
  func.func @transform_4(%arg0: i32) -> (i32, i32) {
    %c0_i32 = arith.constant 0 : i32
    %c0_i32_0 = arith.constant 0 : i32
    %c0_i32_1 = arith.constant 0 : i32
    return %c0_i32, %c0_i32_0 : i32, i32
  }
  func.func @transform_5(%arg0: i32) -> (i32, i32) {
    %c0_i32 = arith.constant 0 : i32
    %c0_i32_0 = arith.constant 0 : i32
    %c0_i32_1 = arith.constant 0 : i32
    return %c0_i32, %c0_i32_0 : i32, i32
  }
  func.func @transform_6(%arg0: i32) -> (i32, i32) {
    %c0_i32 = arith.constant 0 : i32
    %c0_i32_0 = arith.constant 0 : i32
    %c0_i32_1 = arith.constant 0 : i32
    return %c0_i32, %c0_i32_0 : i32, i32
  }
  func.func @transform_7(%arg0: i32) -> (i32, i32) {
    %c0_i32 = arith.constant 0 : i32
    %c0_i32_0 = arith.constant 0 : i32
    %c0_i32_1 = arith.constant 0 : i32
    return %c0_i32, %c0_i32_0 : i32, i32
  }
  func.func @transform_8(%arg0: i32) -> (i32, i32) {
    %c0_i32 = arith.constant 0 : i32
    %c0_i32_0 = arith.constant 0 : i32
    %c0_i32_1 = arith.constant 0 : i32
    return %c0_i32, %c0_i32_0 : i32, i32
  }
  func.func @transform_9(%arg0: i32) -> (i32, i32) {
    %c0_i32 = arith.constant 0 : i32
    %c0_i32_0 = arith.constant 0 : i32
    return %arg0, %c0_i32 : i32, i32
  }
}

</mosaic_0001>

<llo_original>
// kernel: tpu_custom_call.1
$region0: #{tpu_custom_call.1}
  #allocation0 [shape = 'u32[]', space=smem, size = 0x4, offset = 0x4, fixed_abs, tag = 'smem constant byte address 0x4 - core index']
  #allocation1 [shape = 'u32[144,128]{1,0:T(1,128)}', space=vmem, size = 0x12000, scoped, tag = 'internal scratch']
  %s0 = inlined_call_operand.vmem [shape: f32[128,16], index: 0, kind: input, shape index: {}]
  %s1 = inlined_call_operand.vmem [shape: f32[16,128], index: 1, kind: input, shape index: {}]
  %s2 = inlined_call_operand.vmem [shape: f32[1,128], index: 2, kind: input, shape index: {}]
  %s3 = inlined_call_operand.vmem [shape: f32[128,128], index: 3, kind: input, shape index: {}]
  %s4 = inlined_call_operand.vmem [shape: f32[1,128], index: 4, kind: input, shape index: {}]
  %s5 = inlined_call_operand.hbm [shape: f32[128,128], index: 5, kind: input, shape index: {}]
  %s6 = inlined_call_operand.vmem [shape: f32[1,128], index: 6, kind: input, shape index: {}]
  %s7 = inlined_call_operand.hbm [shape: f32[128,128], index: 7, kind: input, shape index: {}]
  %s8 = inlined_call_operand.vmem [shape: f32[1,128], index: 8, kind: input, shape index: {}]
  %s9 = inlined_call_operand.vmem [shape: f32[128,3], index: 9, kind: output, shape index: {}]
  %s10 = sld [smem:[#allocation0]]
  $region54: #{tpu_custom_call.1} parent=0
    _
  %s12 = ssub.s32 1, %s10
  %s13 = scalar_select 0, %s12, %s10
  $region1: #{tpu_custom_call.1} parent=0
    #allocation2 [shape = 'u8[65536]{0}', space=vmem, size = 0x10000, scoped, tag = 'input window, operand 5, single buffered']
    #allocation3 [shape = 's32[1]{0}', space=sflag, size = 0x4, scoped, tag = 'scoped memory for tpu_custom_call.1']
    #allocation4 [shape = 'u8[65536]{0}', space=vmem, size = 0x10000, scoped, tag = 'input window, operand 7, single buffered']
    #allocation5 [shape = 's32[1]{0}', space=sflag, size = 0x4, scoped, tag = 'scoped memory for tpu_custom_call.1']
    %14 = vsyncpa [#allocation3], 0
    %15 = vsyncpa [#allocation5], 0
    // Predicated region
    $region2: #{tpu_custom_call.1} parent=1 // pred_check
      _
    $region3: #{tpu_custom_call.1} parent=1 // pred_check_branch
      %17 = sbr.rel (0) target = $region5
    $region4: #{tpu_custom_call.1} parent=1 // pred_region
      _
    $region5: #{tpu_custom_call.1} parent=1 // pred_fallthru
      _
    // Predicated region
    $region6: #{tpu_custom_call.1} parent=1 // pred_check
      _
    $region7: #{tpu_custom_call.1} parent=1 // pred_check_branch
      %19 = sbr.rel (0) target = $region9
    $region8: #{tpu_custom_call.1} parent=1 // pred_region
      _
    $region9: #{tpu_custom_call.1} parent=1 // pred_fallthru
      _
    // Predicated region
    $region10: #{tpu_custom_call.1} parent=1 // pred_check
      _
    $region11: #{tpu_custom_call.1} parent=1 // pred_check_branch
      %21 = sbr.rel (0) target = $region13
    $region12: #{tpu_custom_call.1} parent=1 // pred_region
      _
    $region13: #{tpu_custom_call.1} parent=1 // pred_fallthru
      _
    // Predicated region
    $region14: #{tpu_custom_call.1} parent=1 // pred_check
      _
    $region15: #{tpu_custom_call.1} parent=1 // pred_check_branch
      %23 = sbr.rel (0) target = $region17
    $region16: #{tpu_custom_call.1} parent=1 // pred_region
      _
    $region17: #{tpu_custom_call.1} parent=1 // pred_fallthru
      _
    // Predicated region
    $region18: #{tpu_custom_call.1} parent=1 // pred_check
      _
    $region19: #{tpu_custom_call.1} parent=1 // pred_check_branch
      %25 = sbr.rel (0) target = $region21
    $region20: #{tpu_custom_call.1} parent=1 // pred_region
      _
    $region21: #{tpu_custom_call.1} parent=1 // pred_fallthru
      _
    // Predicated region
    $region22: #{tpu_custom_call.1} parent=1 // pred_check
      _
    $region23: #{tpu_custom_call.1} parent=1 // pred_check_branch
      %27 = sbr.rel (0) target = $region25
    $region24: #{tpu_custom_call.1} parent=1 // pred_region
      %s29 = ssub.s32 2048, 2048
      %30 = vsyncadd [#allocation3], %s29
      %s31 = sshll.u32 [#allocation2], 4
      %s32 = int_to_ptr.vmem [resolvable:$true] %s31
      %37 = dma.hbm_to_vmem [thread:$0]  %s5, 2048, %s32, [#allocation3], 128, 128, 8
    $region25: #{tpu_custom_call.1} parent=1 // pred_fallthru
      _
    // Predicated region
    $region26: #{tpu_custom_call.1} parent=1 // pred_check
      _
    $region27: #{tpu_custom_call.1} parent=1 // pred_check_branch
      %39 = sbr.rel (0) target = $region29
    $region28: #{tpu_custom_call.1} parent=1 // pred_region
      _
    $region29: #{tpu_custom_call.1} parent=1 // pred_fallthru
      _
    // Predicated region
    $region30: #{tpu_custom_call.1} parent=1 // pred_check
      _
    $region31: #{tpu_custom_call.1} parent=1 // pred_check_branch
      %41 = sbr.rel (0) target = $region33
    $region32: #{tpu_custom_call.1} parent=1 // pred_region
      %s43 = ssub.s32 2048, 2048
      %44 = vsyncadd [#allocation5], %s43
      %s45 = sshll.u32 [#allocation4], 4
      %s46 = int_to_ptr.vmem [resolvable:$true] %s45
      %51 = dma.hbm_to_vmem [thread:$0]  %s7, 2048, %s46, [#allocation5], 128, 128, 8
    $region33: #{tpu_custom_call.1} parent=1 // pred_fallthru
      _
    // Predicated region
    $region34: #{tpu_custom_call.1} parent=1 // pred_check
      _
    $region35: #{tpu_custom_call.1} parent=1 // pred_check_branch
      %53 = sbr.rel (0) target = $region37
    $region36: #{tpu_custom_call.1} parent=1 // pred_region
      _
    $region37: #{tpu_custom_call.1} parent=1 // pred_fallthru
      _
    // Predicated region
    $region38: #{tpu_custom_call.1} parent=1 // pred_check
      _
    $region39: #{tpu_custom_call.1} parent=1 // pred_check_branch
      %55 = sbr.rel (0) target = $region41
    $region40: #{tpu_custom_call.1} parent=1 // pred_region
      %56 = dma.done [#allocation3], 2048
    $region41: #{tpu_custom_call.1} parent=1 // pred_fallthru
      _
    // Predicated region
    $region42: #{tpu_custom_call.1} parent=1 // pred_check
      _
    $region43: #{tpu_custom_call.1} parent=1 // pred_check_branch
      %58 = sbr.rel (0) target = $region45
    $region44: #{tpu_custom_call.1} parent=1 // pred_region
      %59 = dma.done [#allocation5], 2048
    $region45: #{tpu_custom_call.1} parent=1 // pred_fallthru
      _
    %v60 = vld [vmem:[%s0] sm:$0xff]
    %v61 = vld [vmem:[%s0 + $0x8] sm:$0xff]
    %v62 = vld [vmem:[%s0 + $0x10] sm:$0xff]
    %v63 = vld [vmem:[%s0 + $0x18] sm:$0xff]
    %v64 = vld [vmem:[%s0 + $0x20] sm:$0xff]
    %v65 = vld [vmem:[%s0 + $0x28] sm:$0xff]
    %v66 = vld [vmem:[%s0 + $0x30] sm:$0xff]
    %v67 = vld [vmem:[%s0 + $0x38] sm:$0xff]
    %v68 = vld [vmem:[%s0 + $0x40] sm:$0xff]
    %v69 = vld [vmem:[%s0 + $0x48] sm:$0xff]
    %v70 = vld [vmem:[%s0 + $0x50] sm:$0xff]
    %v71 = vld [vmem:[%s0 + $0x58] sm:$0xff]
    %v72 = vld [vmem:[%s0 + $0x60] sm:$0xff]
    %v73 = vld [vmem:[%s0 + $0x68] sm:$0xff]
    %v74 = vld [vmem:[%s0 + $0x70] sm:$0xff]
    %v75 = vld [vmem:[%s0 + $0x78] sm:$0xff]
    %v76 = vld [vmem:[%s1] sm:$0xff]
    %v77 = vld [vmem:[%s1 + $0x8] sm:$0xff]
    %v78 = vld [vmem:[%s2] sm:$0x1]
    %v80 = vlaneseq
    %v81 = vshrl.u32 %v80, 7
    %v82 = vsub.s32 0, %v81
    %v83 = vrot.slane %v78, %v82
    %vm85 = vcmask 130048
    %v87 = vsel %vm85, %v60, 0
    %v90 = vsel %vm85, %v61, 0
    %v93 = vsel %vm85, %v62, 0
    %v96 = vsel %vm85, %v63, 0
    %v99 = vsel %vm85, %v64, 0
    %v102 = vsel %vm85, %v65, 0
    %v105 = vsel %vm85, %v66, 0
    %v108 = vsel %vm85, %v67, 0
    %v111 = vsel %vm85, %v68, 0
    %v114 = vsel %vm85, %v69, 0
    %v117 = vsel %vm85, %v70, 0
    %v120 = vsel %vm85, %v71, 0
    %v123 = vsel %vm85, %v72, 0
    %v126 = vsel %vm85, %v73, 0
    %v129 = vsel %vm85, %v74, 0
    %v132 = vsel %vm85, %v75, 0
    %134 = vmatprep.subr.mxu0 0.0
    %135 = vmatpush1.msra.mxu0 0.0
    %136 = vmatprep.subr.mxu0 0.0
    %137 = vmatpush1.msra.mxu0 0.0
    %138 = vmatprep.subr.mxu0 0.0
    %139 = vmatpush1.msra.mxu0 0.0
    %140 = vmatprep.subr.mxu0 0.0
    %141 = vmatpush1.msra.mxu0 0.0
    %142 = vmatprep.subr.mxu0 0.0
    %143 = vmatpush1.msra.mxu0 0.0
    %144 = vmatprep.subr.mxu0 0.0
    %145 = vmatpush1.msra.mxu0 0.0
    %146 = vmatprep.subr.mxu0 0.0
    %147 = vmatpush1.msra.mxu0 0.0
    %148 = vmatprep.subr.mxu0 0.0
    %149 = vmatpush1.msra.mxu0 0.0
    %150 = vmatprep.subr.mxu0 0.0
    %151 = vmatpush1.msra.mxu0 0.0
    %152 = vmatprep.subr.mxu0 0.0
    %153 = vmatpush1.msra.mxu0 0.0
    %154 = vmatprep.subr.mxu0 0.0
    %155 = vmatpush1.msra.mxu0 0.0
    %156 = vmatprep.subr.mxu0 0.0
    %157 = vmatpush1.msra.mxu0 0.0
    %158 = vmatprep.subr.mxu0 0.0
    %159 = vmatpush1.msra.mxu0 0.0
    %160 = vmatprep.subr.mxu0 0.0
    %161 = vmatpush1.msra.mxu0 0.0
    %162 = vmatprep.subr.mxu0 0.0
    %163 = vmatpush1.msra.mxu0 %v77
    %164 = vmatprep.subr.mxu0 0.0
    %165 = vmatpush1.msra.mxu0 %v76
    %166 = vmatprep.subr.mxu0 0.0
    %167 = vmatpush2.msra.mxu0 0.0
    %168 = vmatprep.subr.mxu0 0.0
    %169 = vmatpush2.msra.mxu0 0.0
    %170 = vmatprep.subr.mxu0 0.0
    %171 = vmatpush2.msra.mxu0 0.0
    %172 = vmatprep.subr.mxu0 0.0
    %173 = vmatpush2.msra.mxu0 0.0
    %174 = vmatprep.subr.mxu0 0.0
    %175 = vmatpush2.msra.mxu0 0.0
    %176 = vmatprep.subr.mxu0 0.0
    %177 = vmatpush2.msra.mxu0 0.0
    %178 = vmatprep.subr.mxu0 0.0
    %179 = vmatpush2.msra.mxu0 0.0
    %180 = vmatprep.subr.mxu0 0.0
    %181 = vmatpush2.msra.mxu0 0.0
    %182 = vmatprep.subr.mxu0 0.0
    %183 = vmatpush2.msra.mxu0 0.0
    %184 = vmatprep.subr.mxu0 0.0
    %185 = vmatpush2.msra.mxu0 0.0
    %186 = vmatprep.subr.mxu0 0.0
    %187 = vmatpush2.msra.mxu0 0.0
    %188 = vmatprep.subr.mxu0 0.0
    %189 = vmatpush2.msra.mxu0 0.0
    %190 = vmatprep.subr.mxu0 0.0
    %191 = vmatpush2.msra.mxu0 0.0
    %192 = vmatprep.subr.mxu0 0.0
    %193 = vmatpush2.msra.mxu0 0.0
    %194 = vmatprep.subr.mxu0 0.0
    %195 = vmatpush2.msra.mxu0 0.0
    %196 = vmatprep.subr.mxu0 0.0
    %197 = vmatpush2.msra.mxu0 0.0
    %198 = vmatprep.mubr.f32.mxu0 0.0
    %199 = vmatmul.mubr.f32.gmra.mxu0 %v87
    %v200 = vpop.f32.mrf.mxu0
    %v201 = vadd.f32 %v83, %v200
    %v202 = vpop.f32.mrf.mxu0
    %203 = vmatprep.mubr.f32.mxu0 0.0
    %204 = vmatmul.mubr.f32.gmra.mxu0 %v90
    %v205 = vpop.f32.mrf.mxu0
    %v206 = vadd.f32 %v83, %v205
    %v207 = vpop.f32.mrf.mxu0
    %208 = vmatprep.mubr.f32.mxu0 0.0
    %209 = vmatmul.mubr.f32.gmra.mxu0 %v93
    %v210 = vpop.f32.mrf.mxu0
    %v211 = vadd.f32 %v83, %v210
    %v212 = vpop.f32.mrf.mxu0
    %213 = vmatprep.mubr.f32.mxu0 0.0
    %214 = vmatmul.mubr.f32.gmra.mxu0 %v96
    %v215 = vpop.f32.mrf.mxu0
    %v216 = vadd.f32 %v83, %v215
    %v217 = vpop.f32.mrf.mxu0
    %218 = vmatprep.mubr.f32.mxu0 0.0
    %219 = vmatmul.mubr.f32.gmra.mxu0 %v99
    %v220 = vpop.f32.mrf.mxu0
    %v221 = vadd.f32 %v83, %v220
    %v222 = vpop.f32.mrf.mxu0
    %223 = vmatprep.mubr.f32.mxu0 0.0
    %224 = vmatmul.mubr.f32.gmra.mxu0 %v102
    %v225 = vpop.f32.mrf.mxu0
    %v226 = vadd.f32 %v83, %v225
    %v227 = vpop.f32.mrf.mxu0
    %228 = vmatprep.mubr.f32.mxu0 0.0
    %229 = vmatmul.mubr.f32.gmra.mxu0 %v105
    %v230 = vpop.f32.mrf.mxu0
    %v231 = vadd.f32 %v83, %v230
    %v232 = vpop.f32.mrf.mxu0
    %233 = vmatprep.mubr.f32.mxu0 0.0
    %234 = vmatmul.mubr.f32.gmra.mxu0 %v108
    %v235 = vpop.f32.mrf.mxu0
    %v236 = vadd.f32 %v83, %v235
    %v237 = vpop.f32.mrf.mxu0
    %238 = vmatprep.mubr.f32.mxu0 0.0
    %239 = vmatmul.mubr.f32.gmra.mxu0 %v111
    %v240 = vpop.f32.mrf.mxu0
    %v241 = vadd.f32 %v83, %v240
    %v242 = vpop.f32.mrf.mxu0
    %243 = vmatprep.mubr.f32.mxu0 0.0
    %244 = vmatmul.mubr.f32.gmra.mxu0 %v114
    %v245 = vpop.f32.mrf.mxu0
    %v246 = vadd.f32 %v83, %v245
    %v247 = vpop.f32.mrf.mxu0
    %248 = vmatprep.mubr.f32.mxu0 0.0
    %249 = vmatmul.mubr.f32.gmra.mxu0 %v117
    %v250 = vpop.f32.mrf.mxu0
    %v251 = vadd.f32 %v83, %v250
    %v252 = vpop.f32.mrf.mxu0
    %253 = vmatprep.mubr.f32.mxu0 0.0
    %254 = vmatmul.mubr.f32.gmra.mxu0 %v120
    %v255 = vpop.f32.mrf.mxu0
    %v256 = vadd.f32 %v83, %v255
    %v257 = vpop.f32.mrf.mxu0
    %258 = vmatprep.mubr.f32.mxu0 0.0
    %259 = vmatmul.mubr.f32.gmra.mxu0 %v123
    %v260 = vpop.f32.mrf.mxu0
    %v261 = vadd.f32 %v83, %v260
    %v262 = vpop.f32.mrf.mxu0
    %263 = vmatprep.mubr.f32.mxu0 0.0
    %264 = vmatmul.mubr.f32.gmra.mxu0 %v126
    %v265 = vpop.f32.mrf.mxu0
    %v266 = vadd.f32 %v83, %v265
    %v267 = vpop.f32.mrf.mxu0
    %268 = vmatprep.mubr.f32.mxu0 0.0
    %269 = vmatmul.mubr.f32.gmra.mxu0 %v129
    %v270 = vpop.f32.mrf.mxu0
    %v271 = vadd.f32 %v83, %v270
    %v272 = vpop.f32.mrf.mxu0
    %273 = vmatprep.mubr.f32.mxu0 0.0
    %274 = vmatmul.mubr.f32.gmra.mxu0 %v132
    %v275 = vpop.f32.mrf.mxu0
    %v276 = vadd.f32 %v83, %v275
    %v277 = vpop.f32.mrf.mxu0
    %278 = vdwg.mxu0
    %v279 = vtanh.pop %v201
    %v280 = vtanh.pop %v206
    %v281 = vtanh.pop %v211
    %v282 = vtanh.pop %v216
    %v283 = vtanh.pop %v221
    %v284 = vtanh.pop %v226
    %v285 = vtanh.pop %v231
    %v286 = vtanh.pop %v236
    %v287 = vtanh.pop %v241
    %v288 = vtanh.pop %v246
    %v289 = vtanh.pop %v251
    %v290 = vtanh.pop %v256
    %v291 = vtanh.pop %v261
    %v292 = vtanh.pop %v266
    %v293 = vtanh.pop %v271
    %v294 = vtanh.pop %v276
    %v295 = vld [vmem:[%s3] sm:$0xff]
    %v296 = vld [vmem:[%s3 + $0x8] sm:$0xff]
    %v297 = vld [vmem:[%s3 + $0x10] sm:$0xff]
    %v298 = vld [vmem:[%s3 + $0x18] sm:$0xff]
    %v299 = vld [vmem:[%s3 + $0x20] sm:$0xff]
    %v300 = vld [vmem:[%s3 + $0x28] sm:$0xff]
    %v301 = vld [vmem:[%s3 + $0x30] sm:$0xff]
    %v302 = vld [vmem:[%s3 + $0x38] sm:$0xff]
    %v303 = vld [vmem:[%s3 + $0x40] sm:$0xff]
    %v304 = vld [vmem:[%s3 + $0x48] sm:$0xff]
    %v305 = vld [vmem:[%s3 + $0x50] sm:$0xff]
    %v306 = vld [vmem:[%s3 + $0x58] sm:$0xff]
    %v307 = vld [vmem:[%s3 + $0x60] sm:$0xff]
    %v308 = vld [vmem:[%s3 + $0x68] sm:$0xff]
    %v309 = vld [vmem:[%s3 + $0x70] sm:$0xff]
    %v310 = vld [vmem:[%s3 + $0x78] sm:$0xff]
    %v311 = vld [vmem:[%s4] sm:$0x1]
    %v313 = vlaneseq
    %v314 = vshrl.u32 %v313, 7
    %v315 = vsub.s32 0, %v314
    %v316 = vrot.slane %v311, %v315
    %318 = vmatprep.subr.mxu0 0.0
    %319 = vmatpush1.msra.mxu0 %v310
    %320 = vmatprep.subr.mxu0 0.0
    %321 = vmatpush1.msra.mxu0 %v309
    %322 = vmatprep.subr.mxu0 0.0
    %323 = vmatpush1.msra.mxu0 %v308
    %324 = vmatprep.subr.mxu0 0.0
    %325 = vmatpush1.msra.mxu0 %v307
    %326 = vmatprep.subr.mxu0 0.0
    %327 = vmatpush1.msra.mxu0 %v306
    %328 = vmatprep.subr.mxu0 0.0
    %329 = vmatpush1.msra.mxu0 %v305
    %330 = vmatprep.subr.mxu0 0.0
    %331 = vmatpush1.msra.mxu0 %v304
    %332 = vmatprep.subr.mxu0 0.0
    %333 = vmatpush1.msra.mxu0 %v303
    %334 = vmatprep.subr.mxu0 0.0
    %335 = vmatpush1.msra.mxu0 %v302
    %336 = vmatprep.subr.mxu0 0.0
    %337 = vmatpush1.msra.mxu0 %v301
    %338 = vmatprep.subr.mxu0 0.0
    %339 = vmatpush1.msra.mxu0 %v300
    %340 = vmatprep.subr.mxu0 0.0
    %341 = vmatpush1.msra.mxu0 %v299
    %342 = vmatprep.subr.mxu0 0.0
    %343 = vmatpush1.msra.mxu0 %v298
    %344 = vmatprep.subr.mxu0 0.0
    %345 = vmatpush1.msra.mxu0 %v297
    %346 = vmatprep.subr.mxu0 0.0
    %347 = vmatpush1.msra.mxu0 %v296
    %348 = vmatprep.subr.mxu0 0.0
    %349 = vmatpush1.msra.mxu0 %v295
    %350 = vmatprep.subr.mxu0 0.0
    %351 = vmatpush2.msra.mxu0 0.0
    %352 = vmatprep.subr.mxu0 0.0
    %353 = vmatpush2.msra.mxu0 0.0
    %354 = vmatprep.subr.mxu0 0.0
    %355 = vmatpush2.msra.mxu0 0.0
    %356 = vmatprep.subr.mxu0 0.0
    %357 = vmatpush2.msra.mxu0 0.0
    %358 = vmatprep.subr.mxu0 0.0
    %359 = vmatpush2.msra.mxu0 0.0
    %360 = vmatprep.subr.mxu0 0.0
    %361 = vmatpush2.msra.mxu0 0.0
    %362 = vmatprep.subr.mxu0 0.0
    %363 = vmatpush2.msra.mxu0 0.0
    %364 = vmatprep.subr.mxu0 0.0
    %365 = vmatpush2.msra.mxu0 0.0
    %366 = vmatprep.subr.mxu0 0.0
    %367 = vmatpush2.msra.mxu0 0.0
    %368 = vmatprep.subr.mxu0 0.0
    %369 = vmatpush2.msra.mxu0 0.0
    %370 = vmatprep.subr.mxu0 0.0
    %371 = vmatpush2.msra.mxu0 0.0
    %372 = vmatprep.subr.mxu0 0.0
    %373 = vmatpush2.msra.mxu0 0.0
    %374 = vmatprep.subr.mxu0 0.0
    %375 = vmatpush2.msra.mxu0 0.0
    %376 = vmatprep.subr.mxu0 0.0
    %377 = vmatpush2.msra.mxu0 0.0
    %378 = vmatprep.subr.mxu0 0.0
    %379 = vmatpush2.msra.mxu0 0.0
    %380 = vmatprep.subr.mxu0 0.0
    %381 = vmatpush2.msra.mxu0 0.0
    %382 = vmatprep.mubr.f32.mxu0 0.0
    %383 = vmatmul.mubr.f32.gmra.mxu0 %v279
    %v384 = vpop.f32.mrf.mxu0
    %v385 = vadd.f32 %v316, %v384
    %v386 = vpop.f32.mrf.mxu0
    %387 = vmatprep.mubr.f32.mxu0 0.0
    %388 = vmatmul.mubr.f32.gmra.mxu0 %v280
    %v389 = vpop.f32.mrf.mxu0
    %v390 = vadd.f32 %v316, %v389
    %v391 = vpop.f32.mrf.mxu0
    %392 = vmatprep.mubr.f32.mxu0 0.0
    %393 = vmatmul.mubr.f32.gmra.mxu0 %v281
    %v394 = vpop.f32.mrf.mxu0
    %v395 = vadd.f32 %v316, %v394
    %v396 = vpop.f32.mrf.mxu0
    %397 = vmatprep.mubr.f32.mxu0 0.0
    %398 = vmatmul.mubr.f32.gmra.mxu0 %v282
    %v399 = vpop.f32.mrf.mxu0
    %v400 = vadd.f32 %v316, %v399
    %v401 = vpop.f32.mrf.mxu0
    %402 = vmatprep.mubr.f32.mxu0 0.0
    %403 = vmatmul.mubr.f32.gmra.mxu0 %v283
    %v404 = vpop.f32.mrf.mxu0
    %v405 = vadd.f32 %v316, %v404
    %v406 = vpop.f32.mrf.mxu0
    %407 = vmatprep.mubr.f32.mxu0 0.0
    %408 = vmatmul.mubr.f32.gmra.mxu0 %v284
    %v409 = vpop.f32.mrf.mxu0
    %v410 = vadd.f32 %v316, %v409
    %v411 = vpop.f32.mrf.mxu0
    %412 = vmatprep.mubr.f32.mxu0 0.0
    %413 = vmatmul.mubr.f32.gmra.mxu0 %v285
    %v414 = vpop.f32.mrf.mxu0
    %v415 = vadd.f32 %v316, %v414
    %v416 = vpop.f32.mrf.mxu0
    %417 = vmatprep.mubr.f32.mxu0 0.0
    %418 = vmatmul.mubr.f32.gmra.mxu0 %v286
    %v419 = vpop.f32.mrf.mxu0
    %v420 = vadd.f32 %v316, %v419
    %v421 = vpop.f32.mrf.mxu0
    %422 = vmatprep.mubr.f32.mxu0 0.0
    %423 = vmatmul.mubr.f32.gmra.mxu0 %v287
    %v424 = vpop.f32.mrf.mxu0
    %v425 = vadd.f32 %v316, %v424
    %v426 = vpop.f32.mrf.mxu0
    %427 = vmatprep.mubr.f32.mxu0 0.0
    %428 = vmatmul.mubr.f32.gmra.mxu0 %v288
    %v429 = vpop.f32.mrf.mxu0
    %v430 = vadd.f32 %v316, %v429
    %v431 = vpop.f32.mrf.mxu0
    %432 = vmatprep.mubr.f32.mxu0 0.0
    %433 = vmatmul.mubr.f32.gmra.mxu0 %v289
    %v434 = vpop.f32.mrf.mxu0
    %v435 = vadd.f32 %v316, %v434
    %v436 = vpop.f32.mrf.mxu0
    %437 = vmatprep.mubr.f32.mxu0 0.0
    %438 = vmatmul.mubr.f32.gmra.mxu0 %v290
    %v439 = vpop.f32.mrf.mxu0
    %v440 = vadd.f32 %v316, %v439
    %v441 = vpop.f32.mrf.mxu0
    %442 = vmatprep.mubr.f32.mxu0 0.0
    %443 = vmatmul.mubr.f32.gmra.mxu0 %v291
    %v444 = vpop.f32.mrf.mxu0
    %v445 = vadd.f32 %v316, %v444
    %v446 = vpop.f32.mrf.mxu0
    %447 = vmatprep.mubr.f32.mxu0 0.0
    %448 = vmatmul.mubr.f32.gmra.mxu0 %v292
    %v449 = vpop.f32.mrf.mxu0
    %v450 = vadd.f32 %v316, %v449
    %v451 = vpop.f32.mrf.mxu0
    %452 = vmatprep.mubr.f32.mxu0 0.0
    %453 = vmatmul.mubr.f32.gmra.mxu0 %v293
    %v454 = vpop.f32.mrf.mxu0
    %v455 = vadd.f32 %v316, %v454
    %v456 = vpop.f32.mrf.mxu0
    %457 = vmatprep.mubr.f32.mxu0 0.0
    %458 = vmatmul.mubr.f32.gmra.mxu0 %v294
    %v459 = vpop.f32.mrf.mxu0
    %v460 = vadd.f32 %v316, %v459
    %v461 = vpop.f32.mrf.mxu0
    %462 = vdwg.mxu0
    %v463 = vtanh.pop %v385
    %v464 = vtanh.pop %v390
    %v465 = vtanh.pop %v395
    %v466 = vtanh.pop %v400
    %v467 = vtanh.pop %v405
    %v468 = vtanh.pop %v410
    %v469 = vtanh.pop %v415
    %v470 = vtanh.pop %v420
    %v471 = vtanh.pop %v425
    %v472 = vtanh.pop %v430
    %v473 = vtanh.pop %v435
    %v474 = vtanh.pop %v440
    %v475 = vtanh.pop %v445
    %v476 = vtanh.pop %v450
    %v477 = vtanh.pop %v455
    %v478 = vtanh.pop %v460
    %v479 = vld [vmem:[#allocation2] sm:$0xff]
    %v480 = vld [vmem:[#allocation2 + $0x8] sm:$0xff]
    %v481 = vld [vmem:[#allocation2 + $0x10] sm:$0xff]
    %v482 = vld [vmem:[#allocation2 + $0x18] sm:$0xff]
    %v483 = vld [vmem:[#allocation2 + $0x20] sm:$0xff]
    %v484 = vld [vmem:[#allocation2 + $0x28] sm:$0xff]
    %v485 = vld [vmem:[#allocation2 + $0x30] sm:$0xff]
    %v486 = vld [vmem:[#allocation2 + $0x38] sm:$0xff]
    %v487 = vld [vmem:[#allocation2 + $0x40] sm:$0xff]
    %v488 = vld [vmem:[#allocation2 + $0x48] sm:$0xff]
    %v489 = vld [vmem:[#allocation2 + $0x50] sm:$0xff]
    %v490 = vld [vmem:[#allocation2 + $0x58] sm:$0xff]
    %v491 = vld [vmem:[#allocation2 + $0x60] sm:$0xff]
    %v492 = vld [vmem:[#allocation2 + $0x68] sm:$0xff]
    %v493 = vld [vmem:[#allocation2 + $0x70] sm:$0xff]
    %v494 = vld [vmem:[#allocation2 + $0x78] sm:$0xff]
    %v495 = vld [vmem:[%s6] sm:$0x1]
    %v497 = vlaneseq
    %v498 = vshrl.u32 %v497, 7
    %v499 = vsub.s32 0, %v498
    %v500 = vrot.slane %v495, %v499
    %502 = vmatprep.subr.mxu0 0.0
    %503 = vmatpush1.msra.mxu0 %v494
    %504 = vmatprep.subr.mxu0 0.0
    %505 = vmatpush1.msra.mxu0 %v493
    %506 = vmatprep.subr.mxu0 0.0
    %507 = vmatpush1.msra.mxu0 %v492
    %508 = vmatprep.subr.mxu0 0.0
    %509 = vmatpush1.msra.mxu0 %v491
    %510 = vmatprep.subr.mxu0 0.0
    %511 = vmatpush1.msra.mxu0 %v490
    %512 = vmatprep.subr.mxu0 0.0
    %513 = vmatpush1.msra.mxu0 %v489
    %514 = vmatprep.subr.mxu0 0.0
    %515 = vmatpush1.msra.mxu0 %v488
    %516 = vmatprep.subr.mxu0 0.0
    %517 = vmatpush1.msra.mxu0 %v487
    %518 = vmatprep.subr.mxu0 0.0
    %519 = vmatpush1.msra.mxu0 %v486
    %520 = vmatprep.subr.mxu0 0.0
    %521 = vmatpush1.msra.mxu0 %v485
    %522 = vmatprep.subr.mxu0 0.0
    %523 = vmatpush1.msra.mxu0 %v484
    %524 = vmatprep.subr.mxu0 0.0
    %525 = vmatpush1.msra.mxu0 %v483
    %526 = vmatprep.subr.mxu0 0.0
    %527 = vmatpush1.msra.mxu0 %v482
    %528 = vmatprep.subr.mxu0 0.0
    %529 = vmatpush1.msra.mxu0 %v481
    %530 = vmatprep.subr.mxu0 0.0
    %531 = vmatpush1.msra.mxu0 %v480
    %532 = vmatprep.subr.mxu0 0.0
    %533 = vmatpush1.msra.mxu0 %v479
    %534 = vmatprep.subr.mxu0 0.0
    %535 = vmatpush2.msra.mxu0 0.0
    %536 = vmatprep.subr.mxu0 0.0
    %537 = vmatpush2.msra.mxu0 0.0
    %538 = vmatprep.subr.mxu0 0.0
    %539 = vmatpush2.msra.mxu0 0.0
    %540 = vmatprep.subr.mxu0 0.0
    %541 = vmatpush2.msra.mxu0 0.0
    %542 = vmatprep.subr.mxu0 0.0
    %543 = vmatpush2.msra.mxu0 0.0
    %544 = vmatprep.subr.mxu0 0.0
    %545 = vmatpush2.msra.mxu0 0.0
    %546 = vmatprep.subr.mxu0 0.0
    %547 = vmatpush2.msra.mxu0 0.0
    %548 = vmatprep.subr.mxu0 0.0
    %549 = vmatpush2.msra.mxu0 0.0
    %550 = vmatprep.subr.mxu0 0.0
    %551 = vmatpush2.msra.mxu0 0.0
    %552 = vmatprep.subr.mxu0 0.0
    %553 = vmatpush2.msra.mxu0 0.0
    %554 = vmatprep.subr.mxu0 0.0
    %555 = vmatpush2.msra.mxu0 0.0
    %556 = vmatprep.subr.mxu0 0.0
    %557 = vmatpush2.msra.mxu0 0.0
    %558 = vmatprep.subr.mxu0 0.0
    %559 = vmatpush2.msra.mxu0 0.0
    %560 = vmatprep.subr.mxu0 0.0
    %561 = vmatpush2.msra.mxu0 0.0
    %562 = vmatprep.subr.mxu0 0.0
    %563 = vmatpush2.msra.mxu0 0.0
    %564 = vmatprep.subr.mxu0 0.0
    %565 = vmatpush2.msra.mxu0 0.0
    %566 = vmatprep.mubr.f32.mxu0 0.0
    %567 = vmatmul.mubr.f32.gmra.mxu0 %v463
    %v568 = vpop.f32.mrf.mxu0
    %v569 = vadd.f32 %v500, %v568
    %v570 = vpop.f32.mrf.mxu0
    %571 = vmatprep.mubr.f32.mxu0 0.0
    %572 = vmatmul.mubr.f32.gmra.mxu0 %v464
    %v573 = vpop.f32.mrf.mxu0
    %v574 = vadd.f32 %v500, %v573
    %v575 = vpop.f32.mrf.mxu0
    %576 = vmatprep.mubr.f32.mxu0 0.0
    %577 = vmatmul.mubr.f32.gmra.mxu0 %v465
    %v578 = vpop.f32.mrf.mxu0
    %v579 = vadd.f32 %v500, %v578
    %v580 = vpop.f32.mrf.mxu0
    %581 = vmatprep.mubr.f32.mxu0 0.0
    %582 = vmatmul.mubr.f32.gmra.mxu0 %v466
    %v583 = vpop.f32.mrf.mxu0
    %v584 = vadd.f32 %v500, %v583
    %v585 = vpop.f32.mrf.mxu0
    %586 = vmatprep.mubr.f32.mxu0 0.0
    %587 = vmatmul.mubr.f32.gmra.mxu0 %v467
    %v588 = vpop.f32.mrf.mxu0
    %v589 = vadd.f32 %v500, %v588
    %v590 = vpop.f32.mrf.mxu0
    %591 = vmatprep.mubr.f32.mxu0 0.0
    %592 = vmatmul.mubr.f32.gmra.mxu0 %v468
    %v593 = vpop.f32.mrf.mxu0
    %v594 = vadd.f32 %v500, %v593
    %v595 = vpop.f32.mrf.mxu0
    %596 = vmatprep.mubr.f32.mxu0 0.0
    %597 = vmatmul.mubr.f32.gmra.mxu0 %v469
    %v598 = vpop.f32.mrf.mxu0
    %v599 = vadd.f32 %v500, %v598
    %v600 = vpop.f32.mrf.mxu0
    %601 = vmatprep.mubr.f32.mxu0 0.0
    %602 = vmatmul.mubr.f32.gmra.mxu0 %v470
    %v603 = vpop.f32.mrf.mxu0
    %v604 = vadd.f32 %v500, %v603
    %v605 = vpop.f32.mrf.mxu0
    %606 = vmatprep.mubr.f32.mxu0 0.0
    %607 = vmatmul.mubr.f32.gmra.mxu0 %v471
    %v608 = vpop.f32.mrf.mxu0
    %v609 = vadd.f32 %v500, %v608
    %v610 = vpop.f32.mrf.mxu0
    %611 = vmatprep.mubr.f32.mxu0 0.0
    %612 = vmatmul.mubr.f32.gmra.mxu0 %v472
    %v613 = vpop.f32.mrf.mxu0
    %v614 = vadd.f32 %v500, %v613
    %v615 = vpop.f32.mrf.mxu0
    %616 = vmatprep.mubr.f32.mxu0 0.0
    %617 = vmatmul.mubr.f32.gmra.mxu0 %v473
    %v618 = vpop.f32.mrf.mxu0
    %v619 = vadd.f32 %v500, %v618
    %v620 = vpop.f32.mrf.mxu0
    %621 = vmatprep.mubr.f32.mxu0 0.0
    %622 = vmatmul.mubr.f32.gmra.mxu0 %v474
    %v623 = vpop.f32.mrf.mxu0
    %v624 = vadd.f32 %v500, %v623
    %v625 = vpop.f32.mrf.mxu0
    %626 = vmatprep.mubr.f32.mxu0 0.0
    %627 = vmatmul.mubr.f32.gmra.mxu0 %v475
    %v628 = vpop.f32.mrf.mxu0
    %v629 = vadd.f32 %v500, %v628
    %v630 = vpop.f32.mrf.mxu0
    %631 = vmatprep.mubr.f32.mxu0 0.0
    %632 = vmatmul.mubr.f32.gmra.mxu0 %v476
    %v633 = vpop.f32.mrf.mxu0
    %v634 = vadd.f32 %v500, %v633
    %v635 = vpop.f32.mrf.mxu0
    %636 = vmatprep.mubr.f32.mxu0 0.0
    %637 = vmatmul.mubr.f32.gmra.mxu0 %v477
    %v638 = vpop.f32.mrf.mxu0
    %v639 = vadd.f32 %v500, %v638
    %v640 = vpop.f32.mrf.mxu0
    %641 = vmatprep.mubr.f32.mxu0 0.0
    %642 = vmatmul.mubr.f32.gmra.mxu0 %v478
    %v643 = vpop.f32.mrf.mxu0
    %v644 = vadd.f32 %v500, %v643
    %v645 = vpop.f32.mrf.mxu0
    %646 = vdwg.mxu0
    %v647 = vtanh.pop %v569
    %v648 = vtanh.pop %v574
    %v649 = vtanh.pop %v579
    %v650 = vtanh.pop %v584
    %v651 = vtanh.pop %v589
    %v652 = vtanh.pop %v594
    %v653 = vtanh.pop %v599
    %v654 = vtanh.pop %v604
    %v655 = vtanh.pop %v609
    %v656 = vtanh.pop %v614
    %v657 = vtanh.pop %v619
    %v658 = vtanh.pop %v624
    %v659 = vtanh.pop %v629
    %v660 = vtanh.pop %v634
    %v661 = vtanh.pop %v639
    %v662 = vtanh.pop %v644
    %v663 = vld [vmem:[#allocation4] sm:$0xff]
    %v664 = vld [vmem:[#allocation4 + $0x8] sm:$0xff]
    %v665 = vld [vmem:[#allocation4 + $0x10] sm:$0xff]
    %v666 = vld [vmem:[#allocation4 + $0x18] sm:$0xff]
    %v667 = vld [vmem:[#allocation4 + $0x20] sm:$0xff]
    %v668 = vld [vmem:[#allocation4 + $0x28] sm:$0xff]
    %v669 = vld [vmem:[#allocation4 + $0x30] sm:$0xff]
    %v670 = vld [vmem:[#allocation4 + $0x38] sm:$0xff]
    %v671 = vld [vmem:[#allocation4 + $0x40] sm:$0xff]
    %v672 = vld [vmem:[#allocation4 + $0x48] sm:$0xff]
    %v673 = vld [vmem:[#allocation4 + $0x50] sm:$0xff]
    %v674 = vld [vmem:[#allocation4 + $0x58] sm:$0xff]
    %v675 = vld [vmem:[#allocation4 + $0x60] sm:$0xff]
    %v676 = vld [vmem:[#allocation4 + $0x68] sm:$0xff]
    %v677 = vld [vmem:[#allocation4 + $0x70] sm:$0xff]
    %v678 = vld [vmem:[#allocation4 + $0x78] sm:$0xff]
    %v679 = vld [vmem:[%s8] sm:$0x1]
    %v681 = vlaneseq
    %v682 = vshrl.u32 %v681, 7
    %v683 = vsub.s32 0, %v682
    %v684 = vrot.slane %v679, %v683
    %686 = vmatprep.subr.mxu0 0.0
    %687 = vmatpush1.msra.mxu0 %v678
    %688 = vmatprep.subr.mxu0 0.0
    %689 = vmatpush1.msra.mxu0 %v677
    %690 = vmatprep.subr.mxu0 0.0
    %691 = vmatpush1.msra.mxu0 %v676
    %692 = vmatprep.subr.mxu0 0.0
    %693 = vmatpush1.msra.mxu0 %v675
    %694 = vmatprep.subr.mxu0 0.0
    %695 = vmatpush1.msra.mxu0 %v674
    %696 = vmatprep.subr.mxu0 0.0
    %697 = vmatpush1.msra.mxu0 %v673
    %698 = vmatprep.subr.mxu0 0.0
    %699 = vmatpush1.msra.mxu0 %v672
    %700 = vmatprep.subr.mxu0 0.0
    %701 = vmatpush1.msra.mxu0 %v671
    %702 = vmatprep.subr.mxu0 0.0
    %703 = vmatpush1.msra.mxu0 %v670
    %704 = vmatprep.subr.mxu0 0.0
    %705 = vmatpush1.msra.mxu0 %v669
    %706 = vmatprep.subr.mxu0 0.0
    %707 = vmatpush1.msra.mxu0 %v668
    %708 = vmatprep.subr.mxu0 0.0
    %709 = vmatpush1.msra.mxu0 %v667
    %710 = vmatprep.subr.mxu0 0.0
    %711 = vmatpush1.msra.mxu0 %v666
    %712 = vmatprep.subr.mxu0 0.0
    %713 = vmatpush1.msra.mxu0 %v665
    %714 = vmatprep.subr.mxu0 0.0
    %715 = vmatpush1.msra.mxu0 %v664
    %716 = vmatprep.subr.mxu0 0.0
    %717 = vmatpush1.msra.mxu0 %v663
    %718 = vmatprep.subr.mxu0 0.0
    %719 = vmatpush2.msra.mxu0 0.0
    %720 = vmatprep.subr.mxu0 0.0
    %721 = vmatpush2.msra.mxu0 0.0
    %722 = vmatprep.subr.mxu0 0.0
    %723 = vmatpush2.msra.mxu0 0.0
    %724 = vmatprep.subr.mxu0 0.0
    %725 = vmatpush2.msra.mxu0 0.0
    %726 = vmatprep.subr.mxu0 0.0
    %727 = vmatpush2.msra.mxu0 0.0
    %728 = vmatprep.subr.mxu0 0.0
    %729 = vmatpush2.msra.mxu0 0.0
    %730 = vmatprep.subr.mxu0 0.0
    %731 = vmatpush2.msra.mxu0 0.0
    %732 = vmatprep.subr.mxu0 0.0
    %733 = vmatpush2.msra.mxu0 0.0
    %734 = vmatprep.subr.mxu0 0.0
    %735 = vmatpush2.msra.mxu0 0.0
    %736 = vmatprep.subr.mxu0 0.0
    %737 = vmatpush2.msra.mxu0 0.0
    %738 = vmatprep.subr.mxu0 0.0
    %739 = vmatpush2.msra.mxu0 0.0
    %740 = vmatprep.subr.mxu0 0.0
    %741 = vmatpush2.msra.mxu0 0.0
    %742 = vmatprep.subr.mxu0 0.0
    %743 = vmatpush2.msra.mxu0 0.0
    %744 = vmatprep.subr.mxu0 0.0
    %745 = vmatpush2.msra.mxu0 0.0
    %746 = vmatprep.subr.mxu0 0.0
    %747 = vmatpush2.msra.mxu0 0.0
    %748 = vmatprep.subr.mxu0 0.0
    %749 = vmatpush2.msra.mxu0 0.0
    %750 = vmatprep.mubr.f32.mxu0 0.0
    %751 = vmatmul.mubr.f32.gmra.mxu0 %v647
    %v752 = vpop.f32.mrf.mxu0
    %v753 = vadd.f32 %v684, %v752
    %v754 = vpop.f32.mrf.mxu0
    %755 = vmatprep.mubr.f32.mxu0 0.0
    %756 = vmatmul.mubr.f32.gmra.mxu0 %v648
    %v757 = vpop.f32.mrf.mxu0
    %v758 = vadd.f32 %v684, %v757
    %v759 = vpop.f32.mrf.mxu0
    %760 = vmatprep.mubr.f32.mxu0 0.0
    %761 = vmatmul.mubr.f32.gmra.mxu0 %v649
    %v762 = vpop.f32.mrf.mxu0
    %v763 = vadd.f32 %v684, %v762
    %v764 = vpop.f32.mrf.mxu0
    %765 = vmatprep.mubr.f32.mxu0 0.0
    %766 = vmatmul.mubr.f32.gmra.mxu0 %v650
    %v767 = vpop.f32.mrf.mxu0
    %v768 = vadd.f32 %v684, %v767
    %v769 = vpop.f32.mrf.mxu0
    %770 = vmatprep.mubr.f32.mxu0 0.0
    %771 = vmatmul.mubr.f32.gmra.mxu0 %v651
    %v772 = vpop.f32.mrf.mxu0
    %v773 = vadd.f32 %v684, %v772
    %v774 = vpop.f32.mrf.mxu0
    %775 = vmatprep.mubr.f32.mxu0 0.0
    %776 = vmatmul.mubr.f32.gmra.mxu0 %v652
    %v777 = vpop.f32.mrf.mxu0
    %v778 = vadd.f32 %v684, %v777
    %v779 = vpop.f32.mrf.mxu0
    %780 = vmatprep.mubr.f32.mxu0 0.0
    %781 = vmatmul.mubr.f32.gmra.mxu0 %v653
    %v782 = vpop.f32.mrf.mxu0
    %v783 = vadd.f32 %v684, %v782
    %v784 = vpop.f32.mrf.mxu0
    %785 = vmatprep.mubr.f32.mxu0 0.0
    %786 = vmatmul.mubr.f32.gmra.mxu0 %v654
    %v787 = vpop.f32.mrf.mxu0
    %v788 = vadd.f32 %v684, %v787
    %v789 = vpop.f32.mrf.mxu0
    %790 = vmatprep.mubr.f32.mxu0 0.0
    %791 = vmatmul.mubr.f32.gmra.mxu0 %v655
    %v792 = vpop.f32.mrf.mxu0
    %v793 = vadd.f32 %v684, %v792
    %v794 = vpop.f32.mrf.mxu0
    %795 = vmatprep.mubr.f32.mxu0 0.0
    %796 = vmatmul.mubr.f32.gmra.mxu0 %v656
    %v797 = vpop.f32.mrf.mxu0
    %v798 = vadd.f32 %v684, %v797
    %v799 = vpop.f32.mrf.mxu0
    %800 = vmatprep.mubr.f32.mxu0 0.0
    %801 = vmatmul.mubr.f32.gmra.mxu0 %v657
    %v802 = vpop.f32.mrf.mxu0
    %v803 = vadd.f32 %v684, %v802
    %v804 = vpop.f32.mrf.mxu0
    %805 = vmatprep.mubr.f32.mxu0 0.0
    %806 = vmatmul.mubr.f32.gmra.mxu0 %v658
    %v807 = vpop.f32.mrf.mxu0
    %v808 = vadd.f32 %v684, %v807
    %v809 = vpop.f32.mrf.mxu0
    %810 = vmatprep.mubr.f32.mxu0 0.0
    %811 = vmatmul.mubr.f32.gmra.mxu0 %v659
    %v812 = vpop.f32.mrf.mxu0
    %v813 = vadd.f32 %v684, %v812
    %v814 = vpop.f32.mrf.mxu0
    %815 = vmatprep.mubr.f32.mxu0 0.0
    %816 = vmatmul.mubr.f32.gmra.mxu0 %v660
    %v817 = vpop.f32.mrf.mxu0
    %v818 = vadd.f32 %v684, %v817
    %v819 = vpop.f32.mrf.mxu0
    %820 = vmatprep.mubr.f32.mxu0 0.0
    %821 = vmatmul.mubr.f32.gmra.mxu0 %v661
    %v822 = vpop.f32.mrf.mxu0
    %v823 = vadd.f32 %v684, %v822
    %v824 = vpop.f32.mrf.mxu0
    %825 = vmatprep.mubr.f32.mxu0 0.0
    %826 = vmatmul.mubr.f32.gmra.mxu0 %v662
    %v827 = vpop.f32.mrf.mxu0
    %v828 = vadd.f32 %v684, %v827
    %v829 = vpop.f32.mrf.mxu0
    %830 = vdwg.mxu0
    %vm831 = vcmask 23552
    %832 = vst.msk [vmem:[%s9] sm:$0xff] %vm831, %v753
    %833 = vst.msk [vmem:[%s9 + $0x8] sm:$0xff] %vm831, %v758
    %834 = vst.msk [vmem:[%s9 + $0x10] sm:$0xff] %vm831, %v763
    %835 = vst.msk [vmem:[%s9 + $0x18] sm:$0xff] %vm831, %v768
    %836 = vst.msk [vmem:[%s9 + $0x20] sm:$0xff] %vm831, %v773
    %837 = vst.msk [vmem:[%s9 + $0x28] sm:$0xff] %vm831, %v778
    %838 = vst.msk [vmem:[%s9 + $0x30] sm:$0xff] %vm831, %v783
    %839 = vst.msk [vmem:[%s9 + $0x38] sm:$0xff] %vm831, %v788
    %840 = vst.msk [vmem:[%s9 + $0x40] sm:$0xff] %vm831, %v793
    %841 = vst.msk [vmem:[%s9 + $0x48] sm:$0xff] %vm831, %v798
    %842 = vst.msk [vmem:[%s9 + $0x50] sm:$0xff] %vm831, %v803
    %843 = vst.msk [vmem:[%s9 + $0x58] sm:$0xff] %vm831, %v808
    %844 = vst.msk [vmem:[%s9 + $0x60] sm:$0xff] %vm831, %v813
    %845 = vst.msk [vmem:[%s9 + $0x68] sm:$0xff] %vm831, %v818
    %846 = vst.msk [vmem:[%s9 + $0x70] sm:$0xff] %vm831, %v823
    %847 = vst.msk [vmem:[%s9 + $0x78] sm:$0xff] %vm831, %v828
    // Predicated region
    $region46: #{tpu_custom_call.1} parent=1 // pred_check
      _
    $region47: #{tpu_custom_call.1} parent=1 // pred_check_branch
      %849 = sbr.rel (0) target = $region49
    $region48: #{tpu_custom_call.1} parent=1 // pred_region
      _
    $region49: #{tpu_custom_call.1} parent=1 // pred_fallthru
      _
    // Predicated region
    $region50: #{tpu_custom_call.1} parent=1 // pred_check
      _
    $region51: #{tpu_custom_call.1} parent=1 // pred_check_branch
      %851 = sbr.rel (0) target = $region53
    $region52: #{tpu_custom_call.1} parent=1 // pred_region
      _
    $region53: #{tpu_custom_call.1} parent=1 // pred_fallthru
      _
    %852 = vsyncpa [#allocation3], 1
    %853 = vsyncpa [#allocation5], 1

</llo_original>
